<compile_context>
chip_gen: v7x
topology: tpu7x:2x2x1
jax: 0.10.0
libtpu: 0.0.40
codegen_flags: <defaults>
</compile_context>

<pallas_src>
import functools

import jax
import jax.numpy as jnp
from jax.experimental import pallas as pl
from jax.experimental.pallas import tpu as pltpu


# ---------------------------------------------------------------------------
# Kernel
# ---------------------------------------------------------------------------
def mlp_kernel(x_ref, w1_ref, b1_ref, w2_ref, b2_ref, w3_ref, b3_ref, o_ref):
    # Layer 1: f32 matmul (MXU), f32 bias + ReLU.
    h1 = jnp.dot(x_ref[...], w1_ref[...], preferred_element_type=jnp.float32)
    h1 = jnp.maximum(h1 + b1_ref[...], 0.0)
    # Layer 2.
    h2 = jnp.dot(h1, w2_ref[...], preferred_element_type=jnp.float32)
    h2 = jnp.maximum(h2 + b2_ref[...], 0.0)
    # Layer 3 (output columns zero-padded to 128 lanes; column 0 is the output).
    out = jnp.dot(h2, w3_ref[...], preferred_element_type=jnp.float32) + b3_ref[...]
    o_ref[...] = out.astype(o_ref.dtype)


# ---------------------------------------------------------------------------
# Helpers
# ---------------------------------------------------------------------------
def _round_up(n, m):
    return ((n + m - 1) // m) * m


def pick_block_b(batch):
    """Batch tile size.

    Small batches: one tile rounded to the 8-row f32 sublane (batch 8 -> 8 rows,
    not 128 -> no wasted padded rows / DMA). Large batches: ~256-row tiles split
    as evenly as possible (256 matches the v6e MXU M dim; an even grid length
    >= 2 lets v7x megacore shard the batch axis across both TensorCores).
    """
    b8 = _round_up(batch, 8)
    if b8 <= 256:
        return b8
    n_tiles = -(-b8 // 256)                 # ceil(b8 / 256)
    return _round_up(-(-b8 // n_tiles), 8)  # even-ish split, 8-row aligned


def prepare_params(w1, b1, w2, b2, w3, b3):
    """One-time parameter prep (run once, outside the per-call hot path).

    Pads the layer-1 contraction dim to a lane-aligned 128 multiple and widens
    the final layer from 1 -> 128 zero output columns for lane-dense stores.
    """
    d_in, size = w1.shape
    d_pad = _round_up(max(d_in, 128), 128)
    n_out = 128

    w1_p = jnp.zeros((d_pad, size), jnp.float32).at[:d_in, :].set(w1)
    w3_p = jnp.zeros((size, n_out), jnp.float32).at[:, :1].set(w3)
    b3_p = jnp.zeros((1, n_out), jnp.float32).at[:, :1].set(b3)

    return {
        "w1": w1_p, "b1": b1.astype(jnp.float32),
        "w2": w2.astype(jnp.float32), "b2": b2.astype(jnp.float32),
        "w3": w3_p, "b3": b3_p,
        "d_in": d_in,
    }


# ---------------------------------------------------------------------------
# Forward
# ---------------------------------------------------------------------------
@functools.partial(jax.jit, static_argnames=("block_b",))
def _mlp_forward_impl(x, w1_p, b1, w2, b2, w3_p, b3_p, *, block_b):
    B, d_in = x.shape
    d_pad, size = w1_p.shape
    n_out = w3_p.shape[1]
    B_pad = _round_up(B, block_b)

    # Only the activation is padded in the hot path (single fused pad op).
    x_p = jnp.pad(x, ((0, B_pad - B), (0, d_pad - d_in)))

    grid = (B_pad // block_b,)
    full = lambda i: (0, 0)  # weights/biases are grid-invariant VMEM residents

    out = pl.pallas_call(
        mlp_kernel,
        out_shape=jax.ShapeDtypeStruct((B_pad, n_out), jnp.float32),
        grid_spec=pltpu.PrefetchScalarGridSpec(
            num_scalar_prefetch=0,
            grid=grid,
            in_specs=[
                pl.BlockSpec((block_b, d_pad), lambda i: (i, 0)),  # x tile
                pl.BlockSpec((d_pad, size), full),                 # W1 (padded)
                pl.BlockSpec((1, size), full),                     # b1
                pl.BlockSpec((size, size), full),                  # W2
                pl.BlockSpec((1, size), full),                     # b2
                pl.BlockSpec((size, n_out), full),                 # W3 (padded)
                pl.BlockSpec((1, n_out), full),                    # b3 (padded)
            ],
            out_specs=pl.BlockSpec((block_b, n_out), lambda i: (i, 0)),
        ),
        compiler_params=pltpu.CompilerParams(
            dimension_semantics=("parallel",),
        ),
    )(x_p, w1_p, b1, w2, b2, w3_p, b3_p)

    # Strip batch padding and the 127 zero output lanes.
    return out[:B, :1]


def mlp_forward(x, params):
    """x: (B, d_in) f32. Returns (B, 1) f32. `params` from prepare_params()."""
    block_b = pick_block_b(x.shape[0])
    return _mlp_forward_impl(
        x, params["w1"], params["b1"], params["w2"], params["b2"],
        params["w3"], params["b3"], block_b=block_b,
    )


# ---------------------------------------------------------------------------
# Reference + init
# ---------------------------------------------------------------------------
def init_linear_params(key, fan_in, fan_out):
    # Matches torch.nn.Linear default init: U(-1/sqrt(fan_in), 1/sqrt(fan_in)).
    kw, kb = jax.random.split(key)
    bound = 1.0 / jnp.sqrt(fan_in)
    w = jax.random.uniform(kw, (fan_in, fan_out), jnp.float32, -bound, bound)
    b = jax.random.uniform(kb, (1, fan_out), jnp.float32, -bound, bound)
    return w, b


def reference_f32(x, w1, b1, w2, b2, w3, b3):
    h1 = jnp.maximum(x @ w1 + b1, 0.0)
    h2 = jnp.maximum(h1 @ w2 + b2, 0.0)
    return h2 @ w3 + b3


# ---------------------------------------------------------------------------
# Main
# ---------------------------------------------------------------------------
if __name__ == "__main__":
    input_dimensions = 32
    size = 256
    batch = 8

    key = jax.random.PRNGKey(0)
    kx, k1, k2, k3 = jax.random.split(key, 4)

    x = jax.random.normal(kx, (batch, input_dimensions), jnp.float32)
    w1, b1 = init_linear_params(k1, input_dimensions, size)
    w2, b2 = init_linear_params(k2, size, size)
    w3, b3 = init_linear_params(k3, size, 1)

    # One-time parameter prep (hoisted out of the per-call path).
    params = prepare_params(w1, b1, w2, b2, w3, b3)

    out = jax.block_until_ready(mlp_forward(x, params))
    assert out.shape == (batch, 1)

    ref = reference_f32(x, w1, b1, w2, b2, w3, b3)
    assert jnp.allclose(out, ref, atol=1e-2, rtol=1e-2), "mismatch vs f32 reference"

    # Non-multiple batch exercising padding, even 2-step grid, multi-tile path.
    xb = jax.random.normal(kx, (300, input_dimensions), jnp.float32)
    outb = jax.block_until_ready(mlp_forward(xb, params))
    refb = reference_f32(xb, w1, b1, w2, b2, w3, b3)
    assert outb.shape == (300, 1)
    assert jnp.allclose(outb, refb, atol=1e-2, rtol=1e-2), "mismatch on padded batch"

    print("KERNEL_OK")
</pallas_src>

<mosaic_0001>
module attributes {stable_mosaic.version = 11 : i64} {
  func.func @mlp_kernel(%arg0: i32, %arg1: memref<8x128xf32, #tpu.memory_space<vmem>>, %arg2: memref<128x256xf32, #tpu.memory_space<vmem>>, %arg3: memref<1x256xf32, #tpu.memory_space<vmem>>, %arg4: memref<256x256xf32, #tpu.memory_space<vmem>>, %arg5: memref<1x256xf32, #tpu.memory_space<vmem>>, %arg6: memref<256x128xf32, #tpu.memory_space<vmem>>, %arg7: memref<1x128xf32, #tpu.memory_space<vmem>>, %arg8: memref<8x128xf32, #tpu.memory_space<vmem>>) attributes {dimension_semantics = [#tpu.dimension_semantics<parallel>], iteration_bounds = array<i64: 1>, scalar_prefetch = 0 : i64, scratch_operands = 0 : i64, tpu.core_type = #tpu.core_type<tc>, window_params = [{transform_indices = @transform_0, window_bounds = array<i64: 8, 128>}, {pipeline_mode = #tpu.pipeline_mode<synchronous>, transform_indices = @transform_1, window_bounds = array<i64: 128, 256>}, {pipeline_mode = #tpu.pipeline_mode<synchronous>, transform_indices = @transform_2, window_bounds = array<i64: 1, 256>}, {pipeline_mode = #tpu.pipeline_mode<synchronous>, transform_indices = @transform_3, window_bounds = array<i64: 256, 256>}, {pipeline_mode = #tpu.pipeline_mode<synchronous>, transform_indices = @transform_4, window_bounds = array<i64: 1, 256>}, {pipeline_mode = #tpu.pipeline_mode<synchronous>, transform_indices = @transform_5, window_bounds = array<i64: 256, 128>}, {pipeline_mode = #tpu.pipeline_mode<synchronous>, transform_indices = @transform_6, window_bounds = array<i64: 1, 128>}, {transform_indices = @transform_7, window_bounds = array<i64: 8, 128>}]} {
    %c0 = arith.constant 0 : index
    %c0_0 = arith.constant 0 : index
    %0 = vector.load %arg1[%c0, %c0_0] : memref<8x128xf32, #tpu.memory_space<vmem>>, vector<8x128xf32>
    %c0_1 = arith.constant 0 : index
    %c0_2 = arith.constant 0 : index
    %1 = vector.load %arg2[%c0_1, %c0_2] : memref<128x256xf32, #tpu.memory_space<vmem>>, vector<128x256xf32>
    %cst = arith.constant dense<0.000000e+00> : vector<8x256xf32>
    %2 = tpu.matmul %0, %1, %cst {dimension_numbers = #tpu.dot_dimension_numbers<[1], [0], [0], [1], [0, 0, 1, 1], [], []>} : vector<8x128xf32>, vector<128x256xf32>, vector<8x256xf32> -> vector<8x256xf32>
    %c0_3 = arith.constant 0 : index
    %c0_4 = arith.constant 0 : index
    %3 = vector.load %arg3[%c0_3, %c0_4] : memref<1x256xf32, #tpu.memory_space<vmem>>, vector<1x256xf32>
    %4 = vector.broadcast %3 : vector<1x256xf32> to vector<8x256xf32>
    %5 = arith.addf %2, %4 : vector<8x256xf32>
    %cst_5 = arith.constant 0.000000e+00 : f32
    %6 = vector.broadcast %cst_5 : f32 to vector<8x256xf32>
    %7 = arith.maximumf %5, %6 : vector<8x256xf32>
    %c0_6 = arith.constant 0 : index
    %c0_7 = arith.constant 0 : index
    %8 = vector.load %arg4[%c0_6, %c0_7] : memref<256x256xf32, #tpu.memory_space<vmem>>, vector<256x256xf32>
    %cst_8 = arith.constant dense<0.000000e+00> : vector<8x256xf32>
    %9 = tpu.matmul %7, %8, %cst_8 {dimension_numbers = #tpu.dot_dimension_numbers<[1], [0], [0], [1], [0, 0, 1, 1], [], []>} : vector<8x256xf32>, vector<256x256xf32>, vector<8x256xf32> -> vector<8x256xf32>
    %c0_9 = arith.constant 0 : index
    %c0_10 = arith.constant 0 : index
    %10 = vector.load %arg5[%c0_9, %c0_10] : memref<1x256xf32, #tpu.memory_space<vmem>>, vector<1x256xf32>
    %11 = vector.broadcast %10 : vector<1x256xf32> to vector<8x256xf32>
    %12 = arith.addf %9, %11 : vector<8x256xf32>
    %cst_11 = arith.constant 0.000000e+00 : f32
    %13 = vector.broadcast %cst_11 : f32 to vector<8x256xf32>
    %14 = arith.maximumf %12, %13 : vector<8x256xf32>
    %c0_12 = arith.constant 0 : index
    %c0_13 = arith.constant 0 : index
    %15 = vector.load %arg6[%c0_12, %c0_13] : memref<256x128xf32, #tpu.memory_space<vmem>>, vector<256x128xf32>
    %cst_14 = arith.constant dense<0.000000e+00> : vector<8x128xf32>
    %16 = tpu.matmul %14, %15, %cst_14 {dimension_numbers = #tpu.dot_dimension_numbers<[1], [0], [0], [1], [0, 0, 1, 1], [], []>} : vector<8x256xf32>, vector<256x128xf32>, vector<8x128xf32> -> vector<8x128xf32>
    %c0_15 = arith.constant 0 : index
    %c0_16 = arith.constant 0 : index
    %17 = vector.load %arg7[%c0_15, %c0_16] : memref<1x128xf32, #tpu.memory_space<vmem>>, vector<1x128xf32>
    %18 = vector.broadcast %17 : vector<1x128xf32> to vector<8x128xf32>
    %19 = arith.addf %16, %18 : vector<8x128xf32>
    %c0_17 = arith.constant 0 : index
    %c0_18 = arith.constant 0 : index
    %20 = vector.load %arg8[%c0_17, %c0_18] : memref<8x128xf32, #tpu.memory_space<vmem>>, vector<8x128xf32>
    tpu.vector_store %arg8[%c0_17, %c0_18], %19 {strides = array<i32>} : memref<8x128xf32, #tpu.memory_space<vmem>>, vector<8x128xf32>,
    return
  }
  func.func @transform_0(%arg0: i32) -> (i32, i32) {
    %c0_i32 = arith.constant 0 : i32
    %c0_i32_0 = arith.constant 0 : i32
    return %arg0, %c0_i32 : i32, i32
  }
  func.func @transform_1(%arg0: i32) -> (i32, i32) {
    %c0_i32 = arith.constant 0 : i32
    %c0_i32_0 = arith.constant 0 : i32
    %c0_i32_1 = arith.constant 0 : i32
    return %c0_i32, %c0_i32_0 : i32, i32
  }
  func.func @transform_2(%arg0: i32) -> (i32, i32) {
    %c0_i32 = arith.constant 0 : i32
    %c0_i32_0 = arith.constant 0 : i32
    %c0_i32_1 = arith.constant 0 : i32
    return %c0_i32, %c0_i32_0 : i32, i32
  }
  func.func @transform_3(%arg0: i32) -> (i32, i32) {
    %c0_i32 = arith.constant 0 : i32
    %c0_i32_0 = arith.constant 0 : i32
    %c0_i32_1 = arith.constant 0 : i32
    return %c0_i32, %c0_i32_0 : i32, i32
  }
  func.func @transform_4(%arg0: i32) -> (i32, i32) {
    %c0_i32 = arith.constant 0 : i32
    %c0_i32_0 = arith.constant 0 : i32
    %c0_i32_1 = arith.constant 0 : i32
    return %c0_i32, %c0_i32_0 : i32, i32
  }
  func.func @transform_5(%arg0: i32) -> (i32, i32) {
    %c0_i32 = arith.constant 0 : i32
    %c0_i32_0 = arith.constant 0 : i32
    %c0_i32_1 = arith.constant 0 : i32
    return %c0_i32, %c0_i32_0 : i32, i32
  }
  func.func @transform_6(%arg0: i32) -> (i32, i32) {
    %c0_i32 = arith.constant 0 : i32
    %c0_i32_0 = arith.constant 0 : i32
    %c0_i32_1 = arith.constant 0 : i32
    return %c0_i32, %c0_i32_0 : i32, i32
  }
  func.func @transform_7(%arg0: i32) -> (i32, i32) {
    %c0_i32 = arith.constant 0 : i32
    %c0_i32_0 = arith.constant 0 : i32
    return %arg0, %c0_i32 : i32, i32
  }
}

</mosaic_0001>

<llo_original>
// kernel: _mlp_forward_impl.1
$region0: #{_mlp_forward_impl.1}
  #allocation0 [shape = 'u32[]', space=smem, size = 0x4, offset = 0x4, fixed_abs, tag = 'smem constant byte address 0x4 - core index']
  #allocation1 [shape = 'u32[144,128]{1,0:T(1,128)}', space=vmem, size = 0x12000, scoped, tag = 'internal scratch']
  %s0 = inlined_call_operand.vmem [shape: f32[8,128], index: 0, kind: input, shape index: {}]
  %s1 = inlined_call_operand.hbm [shape: f32[128,256], index: 1, kind: input, shape index: {}]
  %s2 = inlined_call_operand.vmem [shape: f32[1,256], index: 2, kind: input, shape index: {}]
  %s3 = inlined_call_operand.hbm [shape: f32[256,256], index: 3, kind: input, shape index: {}]
  %s4 = inlined_call_operand.vmem [shape: f32[1,256], index: 4, kind: input, shape index: {}]
  %s5 = inlined_call_operand.hbm [shape: f32[256,128], index: 5, kind: input, shape index: {}]
  %s6 = inlined_call_operand.vmem [shape: f32[1,128], index: 6, kind: input, shape index: {}]
  %s7 = inlined_call_operand.vmem [shape: f32[8,128], index: 7, kind: output, shape index: {}]
  %s8 = sld [smem:[#allocation0]]
  $region50: #{_mlp_forward_impl.1} parent=0
    _
  %s10 = ssub.s32 1, %s8
  %s11 = scalar_select 0, %s10, %s8
  $region1: #{_mlp_forward_impl.1} parent=0
    #allocation2 [shape = 'u8[131072]{0}', space=vmem, size = 0x20000, scoped, tag = 'input window, operand 1, single buffered']
    #allocation3 [shape = 's32[1]{0}', space=sflag, size = 0x4, scoped, tag = 'scoped memory for _mlp_forward_impl.1']
    #allocation4 [shape = 'u8[262144]{0}', space=vmem, size = 0x40000, scoped, tag = 'input window, operand 3, single buffered']
    #allocation5 [shape = 's32[1]{0}', space=sflag, size = 0x4, scoped, tag = 'scoped memory for _mlp_forward_impl.1']
    #allocation6 [shape = 'u8[131072]{0}', space=vmem, size = 0x20000, scoped, tag = 'input window, operand 5, single buffered']
    %12 = vsyncpa [#allocation3], 0
    %13 = vsyncpa [#allocation5], 0
    // Predicated region
    $region2: #{_mlp_forward_impl.1} parent=1 // pred_check
      _
    $region3: #{_mlp_forward_impl.1} parent=1 // pred_check_branch
      %15 = sbr.rel (0) target = $region5
    $region4: #{_mlp_forward_impl.1} parent=1 // pred_region
      _
    $region5: #{_mlp_forward_impl.1} parent=1 // pred_fallthru
      _
    // Predicated region
    $region6: #{_mlp_forward_impl.1} parent=1 // pred_check
      _
    $region7: #{_mlp_forward_impl.1} parent=1 // pred_check_branch
      %17 = sbr.rel (0) target = $region9
    $region8: #{_mlp_forward_impl.1} parent=1 // pred_region
      %s19 = ssub.s32 4096, 4096
      %20 = vsyncadd [#allocation3], %s19
      %s21 = sshll.u32 [#allocation2], 4
      %s22 = int_to_ptr.vmem [resolvable:$true] %s21
      %27 = dma.hbm_to_vmem [thread:$0]  %s1, 4096, %s22, [#allocation3], 256, 256, 16
    $region9: #{_mlp_forward_impl.1} parent=1 // pred_fallthru
      _
    // Predicated region
    $region10: #{_mlp_forward_impl.1} parent=1 // pred_check
      _
    $region11: #{_mlp_forward_impl.1} parent=1 // pred_check_branch
      %29 = sbr.rel (0) target = $region13
    $region12: #{_mlp_forward_impl.1} parent=1 // pred_region
      _
    $region13: #{_mlp_forward_impl.1} parent=1 // pred_fallthru
      _
    // Predicated region
    $region14: #{_mlp_forward_impl.1} parent=1 // pred_check
      _
    $region15: #{_mlp_forward_impl.1} parent=1 // pred_check_branch
      %31 = sbr.rel (0) target = $region17
    $region16: #{_mlp_forward_impl.1} parent=1 // pred_region
      %s33 = ssub.s32 8192, 8192
      %34 = vsyncadd [#allocation5], %s33
      %s35 = sshll.u32 [#allocation4], 4
      %s36 = int_to_ptr.vmem [resolvable:$true] %s35
      %41 = dma.hbm_to_vmem [thread:$0]  %s3, 8192, %s36, [#allocation5], 256, 256, 16
    $region17: #{_mlp_forward_impl.1} parent=1 // pred_fallthru
      _
    // Predicated region
    $region18: #{_mlp_forward_impl.1} parent=1 // pred_check
      _
    $region19: #{_mlp_forward_impl.1} parent=1 // pred_check_branch
      %43 = sbr.rel (0) target = $region21
    $region20: #{_mlp_forward_impl.1} parent=1 // pred_region
      _
    $region21: #{_mlp_forward_impl.1} parent=1 // pred_fallthru
      _
    // Predicated region
    $region22: #{_mlp_forward_impl.1} parent=1 // pred_check
      _
    $region23: #{_mlp_forward_impl.1} parent=1 // pred_check_branch
      %45 = sbr.rel (0) target = $region25
    $region24: #{_mlp_forward_impl.1} parent=1 // pred_region
      %s47 = ssub.s32 4096, 4096
      %48 = vsyncadd [#allocation5], %s47
      %s49 = sshll.u32 [#allocation6], 4
      %s50 = int_to_ptr.vmem [resolvable:$true] %s49
      %55 = dma.hbm_to_vmem [thread:$0]  %s5, 4096, %s50, [#allocation5], 128, 128, 8
    $region25: #{_mlp_forward_impl.1} parent=1 // pred_fallthru
      _
    // Predicated region
    $region26: #{_mlp_forward_impl.1} parent=1 // pred_check
      _
    $region27: #{_mlp_forward_impl.1} parent=1 // pred_check_branch
      %57 = sbr.rel (0) target = $region29
    $region28: #{_mlp_forward_impl.1} parent=1 // pred_region
      _
    $region29: #{_mlp_forward_impl.1} parent=1 // pred_fallthru
      _
    // Predicated region
    $region30: #{_mlp_forward_impl.1} parent=1 // pred_check
      _
    $region31: #{_mlp_forward_impl.1} parent=1 // pred_check_branch
      %59 = sbr.rel (0) target = $region33
    $region32: #{_mlp_forward_impl.1} parent=1 // pred_region
      %60 = dma.done [#allocation3], 4096
    $region33: #{_mlp_forward_impl.1} parent=1 // pred_fallthru
      _
    // Predicated region
    $region34: #{_mlp_forward_impl.1} parent=1 // pred_check
      _
    $region35: #{_mlp_forward_impl.1} parent=1 // pred_check_branch
      %62 = sbr.rel (0) target = $region37
    $region36: #{_mlp_forward_impl.1} parent=1 // pred_region
      %63 = dma.done [#allocation5], 8192
    $region37: #{_mlp_forward_impl.1} parent=1 // pred_fallthru
      _
    // Predicated region
    $region38: #{_mlp_forward_impl.1} parent=1 // pred_check
      _
    $region39: #{_mlp_forward_impl.1} parent=1 // pred_check_branch
      %65 = sbr.rel (0) target = $region41
    $region40: #{_mlp_forward_impl.1} parent=1 // pred_region
      %66 = dma.done [#allocation5], 4096
    $region41: #{_mlp_forward_impl.1} parent=1 // pred_fallthru
      _
    %v67 = vld [vmem:[%s0] sm:$0xff]
    %v68 = vld [vmem:[#allocation2] sm:$0xff]
    %v69 = vld [vmem:[#allocation2 + $0x8] sm:$0xff]
    %v70 = vld [vmem:[#allocation2 + $0x10] sm:$0xff]
    %v71 = vld [vmem:[#allocation2 + $0x18] sm:$0xff]
    %v72 = vld [vmem:[#allocation2 + $0x20] sm:$0xff]
    %v73 = vld [vmem:[#allocation2 + $0x28] sm:$0xff]
    %v74 = vld [vmem:[#allocation2 + $0x30] sm:$0xff]
    %v75 = vld [vmem:[#allocation2 + $0x38] sm:$0xff]
    %v76 = vld [vmem:[#allocation2 + $0x40] sm:$0xff]
    %v77 = vld [vmem:[#allocation2 + $0x48] sm:$0xff]
    %v78 = vld [vmem:[#allocation2 + $0x50] sm:$0xff]
    %v79 = vld [vmem:[#allocation2 + $0x58] sm:$0xff]
    %v80 = vld [vmem:[#allocation2 + $0x60] sm:$0xff]
    %v81 = vld [vmem:[#allocation2 + $0x68] sm:$0xff]
    %v82 = vld [vmem:[#allocation2 + $0x70] sm:$0xff]
    %v83 = vld [vmem:[#allocation2 + $0x78] sm:$0xff]
    %v84 = vld [vmem:[#allocation2 + $0x80] sm:$0xff]
    %v85 = vld [vmem:[#allocation2 + $0x88] sm:$0xff]
    %v86 = vld [vmem:[#allocation2 + $0x90] sm:$0xff]
    %v87 = vld [vmem:[#allocation2 + $0x98] sm:$0xff]
    %v88 = vld [vmem:[#allocation2 + $0xa0] sm:$0xff]
    %v89 = vld [vmem:[#allocation2 + $0xa8] sm:$0xff]
    %v90 = vld [vmem:[#allocation2 + $0xb0] sm:$0xff]
    %v91 = vld [vmem:[#allocation2 + $0xb8] sm:$0xff]
    %v92 = vld [vmem:[#allocation2 + $0xc0] sm:$0xff]
    %v93 = vld [vmem:[#allocation2 + $0xc8] sm:$0xff]
    %v94 = vld [vmem:[#allocation2 + $0xd0] sm:$0xff]
    %v95 = vld [vmem:[#allocation2 + $0xd8] sm:$0xff]
    %v96 = vld [vmem:[#allocation2 + $0xe0] sm:$0xff]
    %v97 = vld [vmem:[#allocation2 + $0xe8] sm:$0xff]
    %v98 = vld [vmem:[#allocation2 + $0xf0] sm:$0xff]
    %v99 = vld [vmem:[#allocation2 + $0xf8] sm:$0xff]
    %v100 = vld [vmem:[%s2] sm:$0x3]
    %v102 = vlaneseq
    %v103 = vshrl.u32 %v102, 7
    %v104 = vsub.s32 0, %v103
    %v105 = vrot.slane %v100, %v104
    %v106 = vlaneseq
    %v107 = vshrl.u32 %v106, 7
    %v108 = vsub.s32 1, %v107
    %v109 = vrot.slane %v100, %v108
    %112 = vmatprep.subr.mxu0 %v69
    %113 = vmatpush1.msra.mxu0 %v68
    %114 = vmatprep.subr.mxu0 %v71
    %115 = vmatpush1.msra.mxu0 %v70
    %116 = vmatprep.subr.mxu0 %v73
    %117 = vmatpush1.msra.mxu0 %v72
    %118 = vmatprep.subr.mxu0 %v75
    %119 = vmatpush1.msra.mxu0 %v74
    %120 = vmatprep.subr.mxu0 %v77
    %121 = vmatpush1.msra.mxu0 %v76
    %122 = vmatprep.subr.mxu0 %v79
    %123 = vmatpush1.msra.mxu0 %v78
    %124 = vmatprep.subr.mxu0 %v81
    %125 = vmatpush1.msra.mxu0 %v80
    %126 = vmatprep.subr.mxu0 %v83
    %127 = vmatpush1.msra.mxu0 %v82
    %128 = vmatprep.subr.mxu0 %v85
    %129 = vmatpush1.msra.mxu0 %v84
    %130 = vmatprep.subr.mxu0 %v87
    %131 = vmatpush1.msra.mxu0 %v86
    %132 = vmatprep.subr.mxu0 %v89
    %133 = vmatpush1.msra.mxu0 %v88
    %134 = vmatprep.subr.mxu0 %v91
    %135 = vmatpush1.msra.mxu0 %v90
    %136 = vmatprep.subr.mxu0 %v93
    %137 = vmatpush1.msra.mxu0 %v92
    %138 = vmatprep.subr.mxu0 %v95
    %139 = vmatpush1.msra.mxu0 %v94
    %140 = vmatprep.subr.mxu0 %v97
    %141 = vmatpush1.msra.mxu0 %v96
    %142 = vmatprep.subr.mxu0 %v99
    %143 = vmatpush1.msra.mxu0 %v98
    %144 = vmatprep.subr.mxu0 0.0
    %145 = vmatpush1.msra.mxu0 0.0
    %146 = vmatprep.subr.mxu0 0.0
    %147 = vmatpush1.msra.mxu0 0.0
    %148 = vmatprep.subr.mxu0 0.0
    %149 = vmatpush1.msra.mxu0 0.0
    %150 = vmatprep.subr.mxu0 0.0
    %151 = vmatpush1.msra.mxu0 0.0
    %152 = vmatprep.subr.mxu0 0.0
    %153 = vmatpush1.msra.mxu0 0.0
    %154 = vmatprep.subr.mxu0 0.0
    %155 = vmatpush1.msra.mxu0 0.0
    %156 = vmatprep.subr.mxu0 0.0
    %157 = vmatpush1.msra.mxu0 0.0
    %158 = vmatprep.subr.mxu0 0.0
    %159 = vmatpush1.msra.mxu0 0.0
    %160 = vmatprep.subr.mxu0 0.0
    %161 = vmatpush1.msra.mxu0 0.0
    %162 = vmatprep.subr.mxu0 0.0
    %163 = vmatpush1.msra.mxu0 0.0
    %164 = vmatprep.subr.mxu0 0.0
    %165 = vmatpush1.msra.mxu0 0.0
    %166 = vmatprep.subr.mxu0 0.0
    %167 = vmatpush1.msra.mxu0 0.0
    %168 = vmatprep.subr.mxu0 0.0
    %169 = vmatpush1.msra.mxu0 0.0
    %170 = vmatprep.subr.mxu0 0.0
    %171 = vmatpush1.msra.mxu0 0.0
    %172 = vmatprep.subr.mxu0 0.0
    %173 = vmatpush1.msra.mxu0 0.0
    %174 = vmatprep.subr.mxu0 0.0
    %175 = vmatpush1.msra.mxu0 0.0
    %176 = vmatprep.mubr.f32.mxu0 0.0
    %177 = vmatmul.mubr.f32.gmra.mrb[0].mxu0 %v67
    %v178 = vpop.f32.mrb[0].mxu0
    %v179 = vadd.f32 %v105, %v178
    %v180 = vpop.f32.mrb[0].mxu0
    %v181 = vadd.f32 %v109, %v180
    %182 = vdwg.mxu0
    %v183 = vmax.f32 %v179, 0.0
    %v184 = vmax.f32 %v181, 0.0
    %v185 = vld [vmem:[#allocation4] sm:$0xff]
    %v186 = vld [vmem:[#allocation4 + $0x8] sm:$0xff]
    %v187 = vld [vmem:[#allocation4 + $0x10] sm:$0xff]
    %v188 = vld [vmem:[#allocation4 + $0x18] sm:$0xff]
    %v189 = vld [vmem:[#allocation4 + $0x20] sm:$0xff]
    %v190 = vld [vmem:[#allocation4 + $0x28] sm:$0xff]
    %v191 = vld [vmem:[#allocation4 + $0x30] sm:$0xff]
    %v192 = vld [vmem:[#allocation4 + $0x38] sm:$0xff]
    %v193 = vld [vmem:[#allocation4 + $0x40] sm:$0xff]
    %v194 = vld [vmem:[#allocation4 + $0x48] sm:$0xff]
    %v195 = vld [vmem:[#allocation4 + $0x50] sm:$0xff]
    %v196 = vld [vmem:[#allocation4 + $0x58] sm:$0xff]
    %v197 = vld [vmem:[#allocation4 + $0x60] sm:$0xff]
    %v198 = vld [vmem:[#allocation4 + $0x68] sm:$0xff]
    %v199 = vld [vmem:[#allocation4 + $0x70] sm:$0xff]
    %v200 = vld [vmem:[#allocation4 + $0x78] sm:$0xff]
    %v201 = vld [vmem:[#allocation4 + $0x80] sm:$0xff]
    %v202 = vld [vmem:[#allocation4 + $0x88] sm:$0xff]
    %v203 = vld [vmem:[#allocation4 + $0x90] sm:$0xff]
    %v204 = vld [vmem:[#allocation4 + $0x98] sm:$0xff]
    %v205 = vld [vmem:[#allocation4 + $0xa0] sm:$0xff]
    %v206 = vld [vmem:[#allocation4 + $0xa8] sm:$0xff]
    %v207 = vld [vmem:[#allocation4 + $0xb0] sm:$0xff]
    %v208 = vld [vmem:[#allocation4 + $0xb8] sm:$0xff]
    %v209 = vld [vmem:[#allocation4 + $0xc0] sm:$0xff]
    %v210 = vld [vmem:[#allocation4 + $0xc8] sm:$0xff]
    %v211 = vld [vmem:[#allocation4 + $0xd0] sm:$0xff]
    %v212 = vld [vmem:[#allocation4 + $0xd8] sm:$0xff]
    %v213 = vld [vmem:[#allocation4 + $0xe0] sm:$0xff]
    %v214 = vld [vmem:[#allocation4 + $0xe8] sm:$0xff]
    %v215 = vld [vmem:[#allocation4 + $0xf0] sm:$0xff]
    %v216 = vld [vmem:[#allocation4 + $0xf8] sm:$0xff]
    %v217 = vld [vmem:[#allocation4 + $0x100] sm:$0xff]
    %v218 = vld [vmem:[#allocation4 + $0x108] sm:$0xff]
    %v219 = vld [vmem:[#allocation4 + $0x110] sm:$0xff]
    %v220 = vld [vmem:[#allocation4 + $0x118] sm:$0xff]
    %v221 = vld [vmem:[#allocation4 + $0x120] sm:$0xff]
    %v222 = vld [vmem:[#allocation4 + $0x128] sm:$0xff]
    %v223 = vld [vmem:[#allocation4 + $0x130] sm:$0xff]
    %v224 = vld [vmem:[#allocation4 + $0x138] sm:$0xff]
    %v225 = vld [vmem:[#allocation4 + $0x140] sm:$0xff]
    %v226 = vld [vmem:[#allocation4 + $0x148] sm:$0xff]
    %v227 = vld [vmem:[#allocation4 + $0x150] sm:$0xff]
    %v228 = vld [vmem:[#allocation4 + $0x158] sm:$0xff]
    %v229 = vld [vmem:[#allocation4 + $0x160] sm:$0xff]
    %v230 = vld [vmem:[#allocation4 + $0x168] sm:$0xff]
    %v231 = vld [vmem:[#allocation4 + $0x170] sm:$0xff]
    %v232 = vld [vmem:[#allocation4 + $0x178] sm:$0xff]
    %v233 = vld [vmem:[#allocation4 + $0x180] sm:$0xff]
    %v234 = vld [vmem:[#allocation4 + $0x188] sm:$0xff]
    %v235 = vld [vmem:[#allocation4 + $0x190] sm:$0xff]
    %v236 = vld [vmem:[#allocation4 + $0x198] sm:$0xff]
    %v237 = vld [vmem:[#allocation4 + $0x1a0] sm:$0xff]
    %v238 = vld [vmem:[#allocation4 + $0x1a8] sm:$0xff]
    %v239 = vld [vmem:[#allocation4 + $0x1b0] sm:$0xff]
    %v240 = vld [vmem:[#allocation4 + $0x1b8] sm:$0xff]
    %v241 = vld [vmem:[#allocation4 + $0x1c0] sm:$0xff]
    %v242 = vld [vmem:[#allocation4 + $0x1c8] sm:$0xff]
    %v243 = vld [vmem:[#allocation4 + $0x1d0] sm:$0xff]
    %v244 = vld [vmem:[#allocation4 + $0x1d8] sm:$0xff]
    %v245 = vld [vmem:[#allocation4 + $0x1e0] sm:$0xff]
    %v246 = vld [vmem:[#allocation4 + $0x1e8] sm:$0xff]
    %v247 = vld [vmem:[#allocation4 + $0x1f0] sm:$0xff]
    %v248 = vld [vmem:[#allocation4 + $0x1f8] sm:$0xff]
    %v249 = vld [vmem:[%s4] sm:$0x3]
    %v251 = vlaneseq
    %v252 = vshrl.u32 %v251, 7
    %v253 = vsub.s32 0, %v252
    %v254 = vrot.slane %v249, %v253
    %v255 = vlaneseq
    %v256 = vshrl.u32 %v255, 7
    %v257 = vsub.s32 1, %v256
    %v258 = vrot.slane %v249, %v257
    %261 = vmatprep.subr.mxu0 %v186
    %262 = vmatpush1.msra.mxu0 %v185
    %263 = vmatprep.subr.mxu0 %v188
    %264 = vmatpush1.msra.mxu0 %v187
    %265 = vmatprep.subr.mxu0 %v190
    %266 = vmatpush1.msra.mxu0 %v189
    %267 = vmatprep.subr.mxu0 %v192
    %268 = vmatpush1.msra.mxu0 %v191
    %269 = vmatprep.subr.mxu0 %v194
    %270 = vmatpush1.msra.mxu0 %v193
    %271 = vmatprep.subr.mxu0 %v196
    %272 = vmatpush1.msra.mxu0 %v195
    %273 = vmatprep.subr.mxu0 %v198
    %274 = vmatpush1.msra.mxu0 %v197
    %275 = vmatprep.subr.mxu0 %v200
    %276 = vmatpush1.msra.mxu0 %v199
    %277 = vmatprep.subr.mxu0 %v202
    %278 = vmatpush1.msra.mxu0 %v201
    %279 = vmatprep.subr.mxu0 %v204
    %280 = vmatpush1.msra.mxu0 %v203
    %281 = vmatprep.subr.mxu0 %v206
    %282 = vmatpush1.msra.mxu0 %v205
    %283 = vmatprep.subr.mxu0 %v208
    %284 = vmatpush1.msra.mxu0 %v207
    %285 = vmatprep.subr.mxu0 %v210
    %286 = vmatpush1.msra.mxu0 %v209
    %287 = vmatprep.subr.mxu0 %v212
    %288 = vmatpush1.msra.mxu0 %v211
    %289 = vmatprep.subr.mxu0 %v214
    %290 = vmatpush1.msra.mxu0 %v213
    %291 = vmatprep.subr.mxu0 %v216
    %292 = vmatpush1.msra.mxu0 %v215
    %293 = vmatprep.subr.mxu0 %v218
    %294 = vmatpush1.msra.mxu0 %v217
    %295 = vmatprep.subr.mxu0 %v220
    %296 = vmatpush1.msra.mxu0 %v219
    %297 = vmatprep.subr.mxu0 %v222
    %298 = vmatpush1.msra.mxu0 %v221
    %299 = vmatprep.subr.mxu0 %v224
    %300 = vmatpush1.msra.mxu0 %v223
    %301 = vmatprep.subr.mxu0 %v226
    %302 = vmatpush1.msra.mxu0 %v225
    %303 = vmatprep.subr.mxu0 %v228
    %304 = vmatpush1.msra.mxu0 %v227
    %305 = vmatprep.subr.mxu0 %v230
    %306 = vmatpush1.msra.mxu0 %v229
    %307 = vmatprep.subr.mxu0 %v232
    %308 = vmatpush1.msra.mxu0 %v231
    %309 = vmatprep.subr.mxu0 %v234
    %310 = vmatpush1.msra.mxu0 %v233
    %311 = vmatprep.subr.mxu0 %v236
    %312 = vmatpush1.msra.mxu0 %v235
    %313 = vmatprep.subr.mxu0 %v238
    %314 = vmatpush1.msra.mxu0 %v237
    %315 = vmatprep.subr.mxu0 %v240
    %316 = vmatpush1.msra.mxu0 %v239
    %317 = vmatprep.subr.mxu0 %v242
    %318 = vmatpush1.msra.mxu0 %v241
    %319 = vmatprep.subr.mxu0 %v244
    %320 = vmatpush1.msra.mxu0 %v243
    %321 = vmatprep.subr.mxu0 %v246
    %322 = vmatpush1.msra.mxu0 %v245
    %323 = vmatprep.subr.mxu0 %v248
    %324 = vmatpush1.msra.mxu0 %v247
    %325 = vmatprep.mubr.f32.mxu0 %v184
    %326 = vmatmul.mubr.f32.gmra.mrb[0].mxu0 %v183
    %v327 = vpop.f32.mrb[0].mxu0
    %v328 = vadd.f32 %v254, %v327
    %v329 = vpop.f32.mrb[0].mxu0
    %v330 = vadd.f32 %v258, %v329
    %331 = vdwg.mxu0
    %v332 = vmax.f32 %v328, 0.0
    %v333 = vmax.f32 %v330, 0.0
    %v334 = vld [vmem:[#allocation6] sm:$0xff]
    %v335 = vld [vmem:[#allocation6 + $0x8] sm:$0xff]
    %v336 = vld [vmem:[#allocation6 + $0x10] sm:$0xff]
    %v337 = vld [vmem:[#allocation6 + $0x18] sm:$0xff]
    %v338 = vld [vmem:[#allocation6 + $0x20] sm:$0xff]
    %v339 = vld [vmem:[#allocation6 + $0x28] sm:$0xff]
    %v340 = vld [vmem:[#allocation6 + $0x30] sm:$0xff]
    %v341 = vld [vmem:[#allocation6 + $0x38] sm:$0xff]
    %v342 = vld [vmem:[#allocation6 + $0x40] sm:$0xff]
    %v343 = vld [vmem:[#allocation6 + $0x48] sm:$0xff]
    %v344 = vld [vmem:[#allocation6 + $0x50] sm:$0xff]
    %v345 = vld [vmem:[#allocation6 + $0x58] sm:$0xff]
    %v346 = vld [vmem:[#allocation6 + $0x60] sm:$0xff]
    %v347 = vld [vmem:[#allocation6 + $0x68] sm:$0xff]
    %v348 = vld [vmem:[#allocation6 + $0x70] sm:$0xff]
    %v349 = vld [vmem:[#allocation6 + $0x78] sm:$0xff]
    %v350 = vld [vmem:[#allocation6 + $0x80] sm:$0xff]
    %v351 = vld [vmem:[#allocation6 + $0x88] sm:$0xff]
    %v352 = vld [vmem:[#allocation6 + $0x90] sm:$0xff]
    %v353 = vld [vmem:[#allocation6 + $0x98] sm:$0xff]
    %v354 = vld [vmem:[#allocation6 + $0xa0] sm:$0xff]
    %v355 = vld [vmem:[#allocation6 + $0xa8] sm:$0xff]
    %v356 = vld [vmem:[#allocation6 + $0xb0] sm:$0xff]
    %v357 = vld [vmem:[#allocation6 + $0xb8] sm:$0xff]
    %v358 = vld [vmem:[#allocation6 + $0xc0] sm:$0xff]
    %v359 = vld [vmem:[#allocation6 + $0xc8] sm:$0xff]
    %v360 = vld [vmem:[#allocation6 + $0xd0] sm:$0xff]
    %v361 = vld [vmem:[#allocation6 + $0xd8] sm:$0xff]
    %v362 = vld [vmem:[#allocation6 + $0xe0] sm:$0xff]
    %v363 = vld [vmem:[#allocation6 + $0xe8] sm:$0xff]
    %v364 = vld [vmem:[#allocation6 + $0xf0] sm:$0xff]
    %v365 = vld [vmem:[#allocation6 + $0xf8] sm:$0xff]
    %v366 = vld [vmem:[%s6] sm:$0x1]
    %v368 = vlaneseq
    %v369 = vshrl.u32 %v368, 7
    %v370 = vsub.s32 0, %v369
    %v371 = vrot.slane %v366, %v370
    %373 = vmatprep.subr.mxu0 0.0
    %374 = vmatpush1.msra.mxu0 %v334
    %375 = vmatprep.subr.mxu0 0.0
    %376 = vmatpush1.msra.mxu0 %v335
    %377 = vmatprep.subr.mxu0 0.0
    %378 = vmatpush1.msra.mxu0 %v336
    %379 = vmatprep.subr.mxu0 0.0
    %380 = vmatpush1.msra.mxu0 %v337
    %381 = vmatprep.subr.mxu0 0.0
    %382 = vmatpush1.msra.mxu0 %v338
    %383 = vmatprep.subr.mxu0 0.0
    %384 = vmatpush1.msra.mxu0 %v339
    %385 = vmatprep.subr.mxu0 0.0
    %386 = vmatpush1.msra.mxu0 %v340
    %387 = vmatprep.subr.mxu0 0.0
    %388 = vmatpush1.msra.mxu0 %v341
    %389 = vmatprep.subr.mxu0 0.0
    %390 = vmatpush1.msra.mxu0 %v342
    %391 = vmatprep.subr.mxu0 0.0
    %392 = vmatpush1.msra.mxu0 %v343
    %393 = vmatprep.subr.mxu0 0.0
    %394 = vmatpush1.msra.mxu0 %v344
    %395 = vmatprep.subr.mxu0 0.0
    %396 = vmatpush1.msra.mxu0 %v345
    %397 = vmatprep.subr.mxu0 0.0
    %398 = vmatpush1.msra.mxu0 %v346
    %399 = vmatprep.subr.mxu0 0.0
    %400 = vmatpush1.msra.mxu0 %v347
    %401 = vmatprep.subr.mxu0 0.0
    %402 = vmatpush1.msra.mxu0 %v348
    %403 = vmatprep.subr.mxu0 0.0
    %404 = vmatpush1.msra.mxu0 %v349
    %405 = vmatprep.subr.mxu0 0.0
    %406 = vmatpush1.msra.mxu0 %v350
    %407 = vmatprep.subr.mxu0 0.0
    %408 = vmatpush1.msra.mxu0 %v351
    %409 = vmatprep.subr.mxu0 0.0
    %410 = vmatpush1.msra.mxu0 %v352
    %411 = vmatprep.subr.mxu0 0.0
    %412 = vmatpush1.msra.mxu0 %v353
    %413 = vmatprep.subr.mxu0 0.0
    %414 = vmatpush1.msra.mxu0 %v354
    %415 = vmatprep.subr.mxu0 0.0
    %416 = vmatpush1.msra.mxu0 %v355
    %417 = vmatprep.subr.mxu0 0.0
    %418 = vmatpush1.msra.mxu0 %v356
    %419 = vmatprep.subr.mxu0 0.0
    %420 = vmatpush1.msra.mxu0 %v357
    %421 = vmatprep.subr.mxu0 0.0
    %422 = vmatpush1.msra.mxu0 %v358
    %423 = vmatprep.subr.mxu0 0.0
    %424 = vmatpush1.msra.mxu0 %v359
    %425 = vmatprep.subr.mxu0 0.0
    %426 = vmatpush1.msra.mxu0 %v360
    %427 = vmatprep.subr.mxu0 0.0
    %428 = vmatpush1.msra.mxu0 %v361
    %429 = vmatprep.subr.mxu0 0.0
    %430 = vmatpush1.msra.mxu0 %v362
    %431 = vmatprep.subr.mxu0 0.0
    %432 = vmatpush1.msra.mxu0 %v363
    %433 = vmatprep.subr.mxu0 0.0
    %434 = vmatpush1.msra.mxu0 %v364
    %435 = vmatprep.subr.mxu0 0.0
    %436 = vmatpush1.msra.mxu0 %v365
    %437 = vmatprep.mubr.f32.mxu0 %v333
    %438 = vmatmul.mubr.f32.gmra.mrb[0].mxu0 %v332
    %v439 = vpop.f32.mrb[0].mxu0
    %v440 = vadd.f32 %v371, %v439
    %v441 = vpop.f32.mrb[0].mxu0
    %442 = vdwg.mxu0
    %443 = vst [vmem:[%s7] sm:$0xff] %v440
    // Predicated region
    $region42: #{_mlp_forward_impl.1} parent=1 // pred_check
      _
    $region43: #{_mlp_forward_impl.1} parent=1 // pred_check_branch
      %445 = sbr.rel (0) target = $region45
    $region44: #{_mlp_forward_impl.1} parent=1 // pred_region
      _
    $region45: #{_mlp_forward_impl.1} parent=1 // pred_fallthru
      _
    // Predicated region
    $region46: #{_mlp_forward_impl.1} parent=1 // pred_check
      _
    $region47: #{_mlp_forward_impl.1} parent=1 // pred_check_branch
      %447 = sbr.rel (0) target = $region49
    $region48: #{_mlp_forward_impl.1} parent=1 // pred_region
      _
    $region49: #{_mlp_forward_impl.1} parent=1 // pred_fallthru
      _
    %448 = vsyncpa [#allocation3], 1
    %449 = vsyncpa [#allocation5], 1

</llo_original>
